<compile_context>
chip_gen: v6e
topology: v6e:2x2x1
jax: 0.10.0
libtpu: 0.0.40
codegen_flags: <defaults>
</compile_context>

<pallas_src>
import functools

import jax
import jax.numpy as jnp
from jax.experimental import pallas as pl
from jax.experimental.pallas import tpu as pltpu

_LANE = 128
_TILE_B = 256  # fixed batch tile (rows); amortizes grid overhead, fills MXU M


def _round_up(x, m):
    return ((x + m - 1) // m) * m


def _logreg_kernel(x_ref, w_ref, tgt_ref, logits_ref, nll_ref, *, num_classes, batch):
    # x arrives f32; cast to bf16 in VMEM (VPU work, hidden under the matmul).
    x = x_ref[...].astype(jnp.bfloat16)        # [TILE_B, F_pad] bf16
    w = w_ref[...]                             # [F_pad, C_pad]  bf16 (resident)

    # Standard MXU orientation, f32 accumulation.
    logits = jnp.dot(x, w, preferred_element_type=jnp.float32)   # [TILE_B, C_pad]
    logits_ref[...] = logits.astype(logits_ref.dtype)            # lane-dense store

    tb, c_pad = logits.shape
    class_ids = jax.lax.broadcasted_iota(jnp.int32, (tb, c_pad), 1)

    # Numerically stable cross entropy; padded classes masked out of the lse.
    valid_class = class_ids < num_classes
    masked = jnp.where(valid_class, logits, jnp.float32(-1e30))
    m = jnp.max(masked, axis=-1, keepdims=True)                       # [TILE_B, 1]
    lse = m + jnp.log(jnp.sum(jnp.exp(masked - m), axis=-1, keepdims=True))

    # Target logit via in-kernel iota==target mask (no one-hot input).
    # TODO(synk): out-of-range targets silently pick a 0 logit (PyTorch errors).
    tmask = class_ids == tgt_ref[...]                                 # [TILE_B, C_pad]
    picked = jnp.sum(jnp.where(tmask, logits, 0.0), axis=-1, keepdims=True)

    # Zero the NLL of batch-padding rows so the wrapper can sum directly.
    row_ids = pl.program_id(0) * tb + jax.lax.broadcasted_iota(jnp.int32, (tb, 1), 0)
    valid_row = row_ids < batch
    nll_ref[...] = jnp.where(valid_row, lse - picked, 0.0)            # [TILE_B, 1]


def logreg_forward(inputs, weight, targets, *, logits_dtype=jnp.float32):
    """inputs: [B, F] f32, weight: [C, F] (PyTorch Linear layout), targets: [B] int.
    Returns (mean cross-entropy loss, logits [B, C]) — same as LogReg.forward."""
    B, F = inputs.shape
    C, Fw = weight.shape
    assert Fw == F, "weight must be [num_classes, num_features]"

    C_pad = _round_up(max(C, _LANE), _LANE)
    F_pad = _round_up(F, _LANE)

    # Batch tiling: fixed large tile, but cap at half the (8-aligned) batch so
    # the grid has >=2 steps (v7x 2-TC sharding) whenever the batch allows.
    half = max(8, _round_up(-(-B // 2), 8))
    tile_b = min(_TILE_B, half)
    B_pad = _round_up(B, tile_b)
    grid = (B_pad // tile_b,)

    # Activations stay f32 (in-kernel bf16 cast); pad batch + feature dims once.
    x = jnp.pad(inputs, ((0, B_pad - B), (0, F_pad - F)))
    # One-time weight transpose + pad to [F_pad, C_pad] bf16 (MXU-native layout).
    w = jnp.zeros((F_pad, C_pad), dtype=jnp.bfloat16).at[:F, :C].set(
        weight.T.astype(jnp.bfloat16))
    tgt = jnp.pad(targets.astype(jnp.int32), (0, B_pad - B)).reshape(B_pad, 1)

    kernel = functools.partial(_logreg_kernel, num_classes=C, batch=B)

    logits_pad, nll = pl.pallas_call(
        kernel,
        out_shape=(
            jax.ShapeDtypeStruct((B_pad, C_pad), logits_dtype),   # padded logits
            jax.ShapeDtypeStruct((B_pad, 1), jnp.float32),        # per-sample NLL
        ),
        grid_spec=pltpu.PrefetchScalarGridSpec(
            num_scalar_prefetch=0,
            grid=grid,
            in_specs=[
                pl.BlockSpec((tile_b, F_pad), lambda i: (i, 0)),   # x tile (f32)
                pl.BlockSpec((F_pad, C_pad), lambda i: (0, 0)),    # weight (resident)
                pl.BlockSpec((tile_b, 1), lambda i: (i, 0)),       # int targets
            ],
            out_specs=[
                pl.BlockSpec((tile_b, C_pad), lambda i: (i, 0)),   # lane-dense logits
                pl.BlockSpec((tile_b, 1), lambda i: (i, 0)),       # per-sample loss
            ],
        ),
        compiler_params=pltpu.CompilerParams(
            dimension_semantics=("parallel",),   # megacore / 2-TC sharding
        ),
    )(x, w, tgt)

    loss = jnp.sum(nll) / B            # padded rows already zeroed in-kernel
    # Slice back to the module's [B, C] output (accepted extra copy; tiny here).
    logits = logits_pad[:B, :C].astype(jnp.float32)
    return loss, logits


def _reference(inputs, weight, targets):
    # Same bf16-in / f32-accumulate semantics as the kernel.
    xb = inputs.astype(jnp.bfloat16).astype(jnp.float32)
    wb = weight.astype(jnp.bfloat16).astype(jnp.float32)
    logits = jnp.dot(xb, wb.T, precision=jax.lax.Precision.HIGHEST)
    nll = (jax.nn.logsumexp(logits, axis=-1)
           - jnp.take_along_axis(logits, targets[:, None], axis=-1)[:, 0])
    return jnp.mean(nll), logits


if __name__ == "__main__":
    key = jax.random.PRNGKey(0)

    # Case 1: small MNIST-like shapes (aligned-ish).
    # Case 2: awkward, non-aligned shapes to exercise batch/feature padding
    #         and the >=2-grid-step path.
    for (B, F, C) in [(8, 64, 10), (50, 100, 10)]:
        key, k_x, k_w, k_t = jax.random.split(key, 4)
        inputs = jax.random.normal(k_x, (B, F), dtype=jnp.float32)
        weight = jax.random.normal(k_w, (C, F), dtype=jnp.float32) * (1.0 / F) ** 0.5
        targets = jax.random.randint(k_t, (B,), 0, C, dtype=jnp.int32)

        loss, logits = logreg_forward(inputs, weight, targets)
        jax.block_until_ready((loss, logits))

        ref_loss, ref_logits = _reference(inputs, weight, targets)
        assert logits.shape == (B, C)
        assert jnp.allclose(logits, ref_logits, atol=1e-3, rtol=1e-3), (B, F, C)
        assert jnp.allclose(loss, ref_loss, atol=1e-3, rtol=1e-3), (B, F, C)

    print("KERNEL_OK")
</pallas_src>

<mosaic_0001>
module attributes {stable_mosaic.version = 11 : i64} {
  func.func @_logreg_kernel(%arg0: i32, %arg1: memref<8x128xf32, #tpu.memory_space<vmem>>, %arg2: memref<128x128xbf16, #tpu.memory_space<vmem>>, %arg3: memref<8x1xi32, #tpu.memory_space<vmem>>, %arg4: memref<8x128xf32, #tpu.memory_space<vmem>>, %arg5: memref<8x1xf32, #tpu.memory_space<vmem>>) attributes {dimension_semantics = [#tpu.dimension_semantics<parallel>], iteration_bounds = array<i64: 1>, scalar_prefetch = 0 : i64, scratch_operands = 0 : i64, tpu.core_type = #tpu.core_type<tc>, window_params = [{transform_indices = @transform_0, window_bounds = array<i64: 8, 128>}, {pipeline_mode = #tpu.pipeline_mode<synchronous>, transform_indices = @transform_1, window_bounds = array<i64: 128, 128>}, {transform_indices = @transform_2, window_bounds = array<i64: 8, 1>}, {transform_indices = @transform_3, window_bounds = array<i64: 8, 128>}, {transform_indices = @transform_4, window_bounds = array<i64: 8, 1>}]} {
    %c0 = arith.constant 0 : index
    %c0_0 = arith.constant 0 : index
    %0 = vector.load %arg1[%c0, %c0_0] : memref<8x128xf32, #tpu.memory_space<vmem>>, vector<8x128xf32>
    %1 = arith.truncf %0 : vector<8x128xf32> to vector<8x128xbf16>
    %c0_1 = arith.constant 0 : index
    %c0_2 = arith.constant 0 : index
    %2 = vector.load %arg2[%c0_1, %c0_2] : memref<128x128xbf16, #tpu.memory_space<vmem>>, vector<128x128xbf16>
    %cst = arith.constant dense<0.000000e+00> : vector<8x128xf32>
    %3 = tpu.matmul %1, %2, %cst {dimension_numbers = #tpu.dot_dimension_numbers<[1], [0], [0], [1], [0, 0, 1, 1], [], []>} : vector<8x128xbf16>, vector<128x128xbf16>, vector<8x128xf32> -> vector<8x128xf32>
    %c0_3 = arith.constant 0 : index
    %c0_4 = arith.constant 0 : index
    %4 = vector.load %arg4[%c0_3, %c0_4] : memref<8x128xf32, #tpu.memory_space<vmem>>, vector<8x128xf32>
    tpu.vector_store %arg4[%c0_3, %c0_4], %3 {strides = array<i32>} : memref<8x128xf32, #tpu.memory_space<vmem>>, vector<8x128xf32>,
    %5 = tpu.iota {dimensions = array<i32: 1>} : vector<8x128xi32>
    %c10_i32 = arith.constant 10 : i32
    %6 = vector.broadcast %c10_i32 : i32 to vector<8x128xi32>
    %7 = arith.cmpi slt, %5, %6 : vector<8x128xi32>
    %cst_5 = arith.constant -1.000000e+30 : f32
    %8 = vector.broadcast %cst_5 : f32 to vector<8x128xf32>
    %9 = arith.select %7, %3, %8 : vector<8x128xi1>, vector<8x128xf32>
    %cst_6 = arith.constant dense<0xFF800000> : vector<8xf32>
    %10 = vector.multi_reduction <maximumf>, %9, %cst_6 [1] : vector<8x128xf32> to vector<8xf32>
    %11 = vector.shape_cast %10 : vector<8xf32> to vector<8x1xf32>
    %12 = vector.broadcast %11 : vector<8x1xf32> to vector<8x128xf32>
    %13 = arith.subf %9, %12 : vector<8x128xf32>
    %14 = math.exp %13 : vector<8x128xf32>
    %cst_7 = arith.constant dense<0.000000e+00> : vector<8xf32>
    %15 = vector.multi_reduction <add>, %14, %cst_7 [1] : vector<8x128xf32> to vector<8xf32>
    %16 = vector.shape_cast %15 : vector<8xf32> to vector<8x1xf32>
    %17 = math.log %16 : vector<8x1xf32>
    %18 = arith.addf %11, %17 : vector<8x1xf32>
    %c0_8 = arith.constant 0 : index
    %c0_9 = arith.constant 0 : index
    %19 = vector.load %arg3[%c0_8, %c0_9] : memref<8x1xi32, #tpu.memory_space<vmem>>, vector<8x1xi32>
    %20 = vector.broadcast %19 : vector<8x1xi32> to vector<8x128xi32>
    %21 = arith.cmpi eq, %5, %20 : vector<8x128xi32>
    %cst_10 = arith.constant 0.000000e+00 : f32
    %22 = vector.broadcast %cst_10 : f32 to vector<8x128xf32>
    %23 = arith.select %21, %3, %22 : vector<8x128xi1>, vector<8x128xf32>
    %cst_11 = arith.constant dense<0.000000e+00> : vector<8xf32>
    %24 = vector.multi_reduction <add>, %23, %cst_11 [1] : vector<8x128xf32> to vector<8xf32>
    %25 = vector.shape_cast %24 : vector<8xf32> to vector<8x1xf32>
    %c8_i32 = arith.constant 8 : i32
    %26 = arith.muli %arg0, %c8_i32 : i32
    %27 = tpu.iota {dimensions = array<i32: 0>} : vector<8x1xi32>
    %28 = vector.broadcast %26 : i32 to vector<8x1xi32>
    %29 = arith.addi %28, %27 : vector<8x1xi32>
    %c8_i32_12 = arith.constant 8 : i32
    %30 = vector.broadcast %c8_i32_12 : i32 to vector<8x1xi32>
    %31 = arith.cmpi slt, %29, %30 : vector<8x1xi32>
    %32 = arith.subf %18, %25 : vector<8x1xf32>
    %cst_13 = arith.constant 0.000000e+00 : f32
    %33 = vector.broadcast %cst_13 : f32 to vector<8x1xf32>
    %34 = arith.select %31, %32, %33 : vector<8x1xi1>, vector<8x1xf32>
    %c0_14 = arith.constant 0 : index
    %c0_15 = arith.constant 0 : index
    %35 = vector.load %arg5[%c0_14, %c0_15] : memref<8x1xf32, #tpu.memory_space<vmem>>, vector<8x1xf32>
    tpu.vector_store %arg5[%c0_14, %c0_15], %34 {strides = array<i32>} : memref<8x1xf32, #tpu.memory_space<vmem>>, vector<8x1xf32>,
    return
  }
  func.func @transform_0(%arg0: i32) -> (i32, i32) {
    %c0_i32 = arith.constant 0 : i32
    %c0_i32_0 = arith.constant 0 : i32
    return %arg0, %c0_i32 : i32, i32
  }
  func.func @transform_1(%arg0: i32) -> (i32, i32) {
    %c0_i32 = arith.constant 0 : i32
    %c0_i32_0 = arith.constant 0 : i32
    %c0_i32_1 = arith.constant 0 : i32
    return %c0_i32, %c0_i32_0 : i32, i32
  }
  func.func @transform_2(%arg0: i32) -> (i32, i32) {
    %c0_i32 = arith.constant 0 : i32
    %c0_i32_0 = arith.constant 0 : i32
    return %arg0, %c0_i32 : i32, i32
  }
  func.func @transform_3(%arg0: i32) -> (i32, i32) {
    %c0_i32 = arith.constant 0 : i32
    %c0_i32_0 = arith.constant 0 : i32
    return %arg0, %c0_i32 : i32, i32
  }
  func.func @transform_4(%arg0: i32) -> (i32, i32) {
    %c0_i32 = arith.constant 0 : i32
    %c0_i32_0 = arith.constant 0 : i32
    return %arg0, %c0_i32 : i32, i32
  }
}

</mosaic_0001>

<llo_original>
// kernel: tpu_custom_call.1
$region0: #{tpu_custom_call.1}
  #allocation0 [shape = 'u32[]', space=smem, size = 0x4, offset = 0x4, fixed_abs, tag = 'smem constant byte address 0x4 - core index']
  #allocation1 [shape = 'u32[144,128]{1,0:T(1,128)}', space=vmem, size = 0x12000, scoped, tag = 'internal scratch']
  %s0 = inlined_call_operand.vmem [shape: f32[8,128], index: 0, kind: input, shape index: {}]
  %s1 = inlined_call_operand.hbm [shape: bf16[128,128], index: 1, kind: input, shape index: {}]
  %s2 = inlined_call_operand.vmem [shape: s32[8,1], index: 2, kind: input, shape index: {}]
  %s3 = inlined_call_operand.hbm [shape: f32[8,128], index: 3, kind: output, shape index: {0}]
  %s4 = inlined_call_operand.vmem [shape: f32[8,1], index: 4, kind: output, shape index: {1}]
  %5 = xla_tuple %s3, %s4
  %s6 = sld [smem:[#allocation0]]
  $region34: #{tpu_custom_call.1} parent=0
    _
  %s8 = ssub.s32 1, %s6
  %s9 = scalar_select 0, %s8, %s6
  $region1: #{tpu_custom_call.1} parent=0
    #allocation2 [shape = 'u8[32768]{0}', space=vmem, size = 0x8000, scoped, tag = 'input window, operand 1, single buffered']
    #allocation3 [shape = 's32[1]{0}', space=sflag, size = 0x4, scoped, tag = 'scoped memory for tpu_custom_call.1']
    #allocation4 [shape = 's32[1]{0}', space=sflag, size = 0x4, scoped, tag = 'scoped memory for tpu_custom_call.1']
    #allocation5 [shape = 'u8[4096]{0}', space=vmem, size = 0x1000, scoped, tag = 'output window, operand 0, single buffered']
    %10 = vsyncpa [#allocation3], 0
    %11 = vsyncpa [#allocation4], 0
    // Predicated region
    $region2: #{tpu_custom_call.1} parent=1 // pred_check
      _
    $region3: #{tpu_custom_call.1} parent=1 // pred_check_branch
      %13 = sbr.rel (0) target = $region5
    $region4: #{tpu_custom_call.1} parent=1 // pred_region
      _
    $region5: #{tpu_custom_call.1} parent=1 // pred_fallthru
      _
    // Predicated region
    $region6: #{tpu_custom_call.1} parent=1 // pred_check
      _
    $region7: #{tpu_custom_call.1} parent=1 // pred_check_branch
      %15 = sbr.rel (0) target = $region9
    $region8: #{tpu_custom_call.1} parent=1 // pred_region
      %s17 = ssub.s32 1024, 1024
      %18 = vsyncadd [#allocation3], %s17
      %s19 = sshll.u32 [#allocation2], 4
      %s20 = int_to_ptr.vmem [resolvable:$true] %s19
      %25 = dma.hbm_to_vmem [thread:$0]  %s1, 1024, %s20, [#allocation3], 64, 64, 4
    $region9: #{tpu_custom_call.1} parent=1 // pred_fallthru
      _
    // Predicated region
    $region10: #{tpu_custom_call.1} parent=1 // pred_check
      _
    $region11: #{tpu_custom_call.1} parent=1 // pred_check_branch
      %27 = sbr.rel (0) target = $region13
    $region12: #{tpu_custom_call.1} parent=1 // pred_region
      _
    $region13: #{tpu_custom_call.1} parent=1 // pred_fallthru
      _
    // Predicated region
    $region14: #{tpu_custom_call.1} parent=1 // pred_check
      _
    $region15: #{tpu_custom_call.1} parent=1 // pred_check_branch
      %29 = sbr.rel (0) target = $region17
    $region16: #{tpu_custom_call.1} parent=1 // pred_region
      %30 = dma.done [#allocation3], 1024
    $region17: #{tpu_custom_call.1} parent=1 // pred_fallthru
      _
    %v32 = vld [vmem:[%s0] sm:$0xff]
    %v33 = vpack.c.bf16 %v32, %v32
    %v34 = vld [vmem:[#allocation2] sm:$0xf]
    %v35 = vld [vmem:[#allocation2 + $0x4] sm:$0xf]
    %v36 = vld [vmem:[#allocation2 + $0x8] sm:$0xf]
    %v37 = vld [vmem:[#allocation2 + $0xc] sm:$0xf]
    %v38 = vld [vmem:[#allocation2 + $0x10] sm:$0xf]
    %v39 = vld [vmem:[#allocation2 + $0x14] sm:$0xf]
    %v40 = vld [vmem:[#allocation2 + $0x18] sm:$0xf]
    %v41 = vld [vmem:[#allocation2 + $0x1c] sm:$0xf]
    %v42 = vld [vmem:[#allocation2 + $0x20] sm:$0xf]
    %v43 = vld [vmem:[#allocation2 + $0x24] sm:$0xf]
    %v44 = vld [vmem:[#allocation2 + $0x28] sm:$0xf]
    %v45 = vld [vmem:[#allocation2 + $0x2c] sm:$0xf]
    %v46 = vld [vmem:[#allocation2 + $0x30] sm:$0xf]
    %v47 = vld [vmem:[#allocation2 + $0x34] sm:$0xf]
    %v48 = vld [vmem:[#allocation2 + $0x38] sm:$0xf]
    %v49 = vld [vmem:[#allocation2 + $0x3c] sm:$0xf]
    %v66 = vunpack.c.l.b16 %v34
    %v67 = vunpack.c.l.b16 %v35
    %v68 = vunpack.c.l.b16 %v36
    %v69 = vunpack.c.l.b16 %v37
    %v70 = vunpack.c.l.b16 %v38
    %v71 = vunpack.c.l.b16 %v39
    %v72 = vunpack.c.l.b16 %v40
    %v73 = vunpack.c.l.b16 %v41
    %v74 = vunpack.c.l.b16 %v42
    %v75 = vunpack.c.l.b16 %v43
    %v76 = vunpack.c.l.b16 %v44
    %v77 = vunpack.c.l.b16 %v45
    %v78 = vunpack.c.l.b16 %v46
    %v79 = vunpack.c.l.b16 %v47
    %v80 = vunpack.c.l.b16 %v48
    %v81 = vunpack.c.l.b16 %v49
    %v82 = vpack.c.b16 %v67, %v66
    %v83 = vpack.c.b16 %v69, %v68
    %v84 = vpack.c.b16 %v71, %v70
    %v85 = vpack.c.b16 %v73, %v72
    %v86 = vpack.c.b16 %v75, %v74
    %v87 = vpack.c.b16 %v77, %v76
    %v88 = vpack.c.b16 %v79, %v78
    %v89 = vpack.c.b16 %v81, %v80
    %98 = vmatprep.subr.bf16.mxu0 0
    %99 = vmatpush1.bf16.msra.mxu0 %v89
    %100 = vmatprep.subr.bf16.mxu0 0
    %101 = vmatpush1.bf16.msra.mxu0 %v88
    %102 = vmatprep.subr.bf16.mxu0 0
    %103 = vmatpush1.bf16.msra.mxu0 %v87
    %104 = vmatprep.subr.bf16.mxu0 0
    %105 = vmatpush1.bf16.msra.mxu0 %v86
    %106 = vmatprep.subr.bf16.mxu0 0
    %107 = vmatpush1.bf16.msra.mxu0 %v85
    %108 = vmatprep.subr.bf16.mxu0 0
    %109 = vmatpush1.bf16.msra.mxu0 %v84
    %110 = vmatprep.subr.bf16.mxu0 0
    %111 = vmatpush1.bf16.msra.mxu0 %v83
    %112 = vmatprep.subr.bf16.mxu0 0
    %113 = vmatpush1.bf16.msra.mxu0 %v82
    %114 = vmatprep.subr.bf16.mxu0 0
    %115 = vmatpush2.bf16.msra.mxu0 0
    %116 = vmatprep.subr.bf16.mxu0 0
    %117 = vmatpush2.bf16.msra.mxu0 0
    %118 = vmatprep.subr.bf16.mxu0 0
    %119 = vmatpush2.bf16.msra.mxu0 0
    %120 = vmatprep.subr.bf16.mxu0 0
    %121 = vmatpush2.bf16.msra.mxu0 0
    %122 = vmatprep.subr.bf16.mxu0 0
    %123 = vmatpush2.bf16.msra.mxu0 0
    %124 = vmatprep.subr.bf16.mxu0 0
    %125 = vmatpush2.bf16.msra.mxu0 0
    %126 = vmatprep.subr.bf16.mxu0 0
    %127 = vmatpush2.bf16.msra.mxu0 0
    %128 = vmatprep.subr.bf16.mxu0 0
    %129 = vmatpush2.bf16.msra.mxu0 0
    %130 = vmatprep.mubr.bf16.mxu0 0
    %131 = vmatmul.mubr.bf16.gmra.mxu0 %v33
    %v132 = vpop.f32.mrf.mxu0
    %v133 = vadd.f32 0.0, %v132
    %v134 = vpop.f32.mrf.mxu0
    %v135 = vpop.f32.mrf.mxu0
    %v136 = vpop.f32.mrf.mxu0
    %137 = vdwg.mxu0
    %138 = vst [vmem:[#allocation5] sm:$0xff] %v133
    %v139 = vlaneseq
    %v140 = vand.u32 %v139, 127
    %vm141 = vcmp.lt.s32.totalorder %v140, 10
    %v142 = vsel %vm141, %v133, -1e+30
    %143 = vmax.xlane.f32.xlu0 %v142
    %v144 = vpop.xlane.xlu0 %143
    %v145 = vsub.f32 %v142, %v144
    %v146 = vmul.f32 %v145, 1.442695
    %v147 = vpow.pop %v146
    %148 = vadd.xlane.f32.xlu0 %v147
    %v149 = vpop.xlane.xlu0 %148
    %v150 = vlog2.pop %v149
    %v151 = vmul.f32 %v150, 0.6931472
    %v152 = vadd.f32 %v144, %v151
    %v153 = vld [vmem:[%s2] sm:$0xff]
    %154 = vset.pattern.permute.xlu0 0
    %155 = vperm.xlu0 %154, %v153
    %v156 = vpop.permute.xlu0 %155
    %vm157 = vcmp.eq.s32.totalorder %v140, %v156
    %v158 = vsel %vm157, %v133, 0.0
    %159 = vadd.xlane.f32.xlu0 %v158
    %v160 = vpop.xlane.xlu0 %159
    %s161 = smul.u32 0, 8
    %v162 = vlaneseq
    %v163 = vshrl.u32 %v162, 7
    %v164 = vstv %s161
    %v165 = vadd.s32 %v164, %v163
    %vm166 = vcmp.lt.s32.totalorder %v165, 8
    %v167 = vsub.f32 %v152, %v160
    %v168 = vsel %vm166, %v167, 0.0
    %vm169 = vcmask 7168
    %170 = vst.msk [vmem:[%s4] sm:$0xff] %vm169, %v168
    // Predicated region
    $region18: #{tpu_custom_call.1} parent=1 // pred_check
      _
    $region19: #{tpu_custom_call.1} parent=1 // pred_check_branch
      %172 = sbr.rel (0) target = $region21
    $region20: #{tpu_custom_call.1} parent=1 // pred_region
      %s174 = ssub.s32 128, 128
      %175 = vsyncadd [#allocation4], %s174
      %s177 = sshll.u32 [#allocation5], 4
      %s178 = int_to_ptr.vmem [resolvable:$true] %s177
      %180 = dma.vmem_to_hbm [thread:$0]  %s178, 128, %s3, [#allocation4]
    $region21: #{tpu_custom_call.1} parent=1 // pred_fallthru
      _
    // Predicated region
    $region22: #{tpu_custom_call.1} parent=1 // pred_check
      _
    $region23: #{tpu_custom_call.1} parent=1 // pred_check_branch
      %182 = sbr.rel (0) target = $region25
    $region24: #{tpu_custom_call.1} parent=1 // pred_region
      _
    $region25: #{tpu_custom_call.1} parent=1 // pred_fallthru
      _
    // Predicated region
    $region26: #{tpu_custom_call.1} parent=1 // pred_check
      _
    $region27: #{tpu_custom_call.1} parent=1 // pred_check_branch
      %184 = sbr.rel (0) target = $region29
    $region28: #{tpu_custom_call.1} parent=1 // pred_region
      %185 = dma.done [#allocation4], 128
    $region29: #{tpu_custom_call.1} parent=1 // pred_fallthru
      _
    // Predicated region
    $region30: #{tpu_custom_call.1} parent=1 // pred_check
      _
    $region31: #{tpu_custom_call.1} parent=1 // pred_check_branch
      %187 = sbr.rel (0) target = $region33
    $region32: #{tpu_custom_call.1} parent=1 // pred_region
      _
    $region33: #{tpu_custom_call.1} parent=1 // pred_fallthru
      _
    %188 = vsyncpa [#allocation3], 1
    %189 = vsyncpa [#allocation4], 1

</llo_original>
